<compile_context>
chip_gen: v6e
topology: v6e:2x2x1
jax: 0.10.0
libtpu: 0.0.40
codegen_flags: <defaults>
</compile_context>

<pallas_src>
import functools

import jax
import jax.numpy as jnp
from jax.experimental import pallas as pl
from jax.experimental.pallas import tpu as pltpu


def _non_local_kernel(x_ref, proj_ref, tab_ref, o_ref, *, n_true):
    x = x_ref[...]                                   # (bt, C, Np) f32
    bt, c, npad = x.shape

    proj = proj_ref[...]                             # (3, C+1): theta, phi, g
    wth, bth = proj[0:1, :c], proj[0:1, c:]          # (1, C), (1, 1)
    wph, bph = proj[1:2, :c], proj[1:2, c:]
    wg,  bg  = proj[2:3, :c], proj[2:3, c:]

    # 1x1-conv projections on the VPU: per-channel multiply + sublane-axis
    # reduction (no tiny MXU matmul, no explicit broadcast materialization).
    theta = jnp.sum(x * wth[:, :, None], axis=1, keepdims=True) + bth[:, :, None]
    phi   = jnp.sum(x * wph[:, :, None], axis=1, keepdims=True) + bph[:, :, None]
    g     = jnp.sum(x * wg[:, :, None],  axis=1, keepdims=True) + bg[:, :, None]

    # Reassociated attention: y = theta * (phi . g) / N  (exact for k == 1).
    pg = phi * g                                     # (bt, 1, Np)
    if npad != n_true:
        # Zero-padded lanes carry the projection biases -> mask them out of
        # the reduction; the divisor stays the true (unpadded) N.
        lane = jax.lax.broadcasted_iota(jnp.int32, (1, 1, npad), 2)
        pg = jnp.where(lane < n_true, pg, 0.0)
    s = jnp.sum(pg, axis=-1, keepdims=True)          # (bt, 1, 1)
    y = theta * (s * (1.0 / n_true))                 # (bt, 1, Np)

    # W 1x1-conv (1 -> C) fused with BatchNorm (eval) into per-channel
    # scale/shift, then the residual add.
    scale = tab_ref[:, 0:1]                          # (C, 1)
    shift = tab_ref[:, 1:2]                          # (C, 1)
    o_ref[...] = x + y * scale[None, :, :] + shift[None, :, :]


def non_local_pallas(x_nchw, params, *, vmem_budget_bytes=32 * 1024 * 1024):
    """x_nchw: (B, C, H, W) float32. Returns (B, C, H, W) float32."""
    (wg, bg, wth, bth, wph, bph, wW, bW, gamma, beta, mean, var) = params
    B, C, H, W = x_nchw.shape
    N = H * W
    # Lane-dense N: pad to a multiple of 128 so stores are unmasked vst.
    N_pad = ((N + 127) // 128) * 128

    x_bcn = x_nchw.reshape(B, C, N)                  # free: N stays on lanes
    if N_pad != N:
        x_bcn = jnp.pad(x_bcn, ((0, 0), (0, 0), (0, N_pad - N)))

    # Pack g/theta/phi projection weights + biases into one (3, C+1) block.
    proj = jnp.concatenate([
        jnp.concatenate([wth.T, bth], axis=1),       # row 0: theta
        jnp.concatenate([wph.T, bph], axis=1),       # row 1: phi
        jnp.concatenate([wg.T,  bg],  axis=1),       # row 2: g
    ], axis=0).astype(jnp.float32)                   # (3, C+1)

    # Fold W-conv (1->C) + BatchNorm (running stats) into per-channel scale/shift.
    inv_std = jax.lax.rsqrt(var + 1e-5)                                # (1, C)
    scale = (wW * gamma * inv_std).reshape(C, 1)
    shift = ((bW - mean) * gamma * inv_std + beta).reshape(C, 1)
    tab = jnp.concatenate([scale, shift], axis=1).astype(jnp.float32)  # (C, 2)

    # Block sizing against the REAL VMEM cost: input block + output block,
    # each double-buffered, with the channel axis padded to 8 sublanes.
    c_pad = ((C + 7) // 8) * 8
    bytes_per_batch = c_pad * N_pad * 4
    n_resident_bufs = 4                              # (in + out) x 2 buffers
    bt = max(1, min(B, vmem_budget_bytes // max(n_resident_bufs * bytes_per_batch, 1)))
    # >= 2 grid steps so v7x's two TensorCores both get work (neutral on v5e/v6e).
    bt = min(bt, max(1, B // 2))
    while B % bt != 0:
        bt -= 1

    cost = pl.CostEstimate(
        flops=(6 * C + 8) * B * N,
        transcendentals=0,
        bytes_accessed=2 * B * C * N * 4,
    )

    kernel = functools.partial(_non_local_kernel, n_true=N)

    out = pl.pallas_call(
        kernel,
        out_shape=jax.ShapeDtypeStruct((B, C, N_pad), jnp.float32),
        grid_spec=pltpu.PrefetchScalarGridSpec(
            num_scalar_prefetch=0,
            grid=(B // bt,),
            in_specs=[
                pl.BlockSpec((bt, C, N_pad), lambda b: (b, 0, 0)),   # x
                pl.BlockSpec((3, C + 1), lambda b: (0, 0)),          # packed proj (resident)
                pl.BlockSpec((C, 2), lambda b: (0, 0)),              # scale/shift (resident)
            ],
            out_specs=pl.BlockSpec((bt, C, N_pad), lambda b: (b, 0, 0)),
        ),
        compiler_params=pltpu.CompilerParams(
            dimension_semantics=("parallel",),
            # Enough for 4 x 8 MiB double-buffered blocks; within physical
            # VMEM on v5e/v6e (128 MiB) and v7x (64 MiB).
            vmem_limit_bytes=48 * 1024 * 1024,
        ),
        input_output_aliases={0: 0},                 # donate x's (B,C,Np) slab
        cost_estimate=cost,
    )(x_bcn, proj, tab)

    if N_pad != N:
        out = out[:, :, :N]
    return out.reshape(B, C, H, W)


def non_local_ref(x_nchw, params):
    """Pure-JAX reference of the PyTorch forward (materializes the (N,N) f)."""
    (wg, bg, wth, bth, wph, bph, wW, bW, gamma, beta, mean, var) = params
    B, C, H, W = x_nchw.shape
    N = H * W
    xr = jnp.transpose(x_nchw.reshape(B, C, N), (0, 2, 1))       # (B, N, C)
    g = xr @ wg + bg                                             # (B, N, 1)
    theta = xr @ wth + bth                                       # (B, N, 1)
    phi = xr @ wph + bph                                         # (B, N, 1)
    f = jnp.einsum('bik,bjk->bij', theta, phi) / N               # (B, N, N)
    y = f @ g                                                    # (B, N, 1)
    w_y = y * wW + bW                                            # (B, N, C)
    w_y = (w_y - mean) * jax.lax.rsqrt(var + 1e-5) * gamma + beta
    z = w_y + xr
    return jnp.transpose(z, (0, 2, 1)).reshape(B, C, H, W)


def make_params(key, in_channels, random_bn=False):
    C = in_channels
    ks = jax.random.split(key, 12)
    wg = 0.1 * jax.random.normal(ks[0], (C, 1), jnp.float32)   # g: Conv2d(C->1,1x1)
    bg = 0.1 * jax.random.normal(ks[1], (1, 1), jnp.float32)
    wth = 0.1 * jax.random.normal(ks[2], (C, 1), jnp.float32)  # theta
    bth = 0.1 * jax.random.normal(ks[3], (1, 1), jnp.float32)
    wph = 0.1 * jax.random.normal(ks[4], (C, 1), jnp.float32)  # phi
    bph = 0.1 * jax.random.normal(ks[5], (1, 1), jnp.float32)
    wW = 0.1 * jax.random.normal(ks[6], (1, C), jnp.float32)   # W: Conv2d(1->C,1x1)
    bW = 0.1 * jax.random.normal(ks[7], (1, C), jnp.float32)
    if random_bn:
        # Non-trivial BN stats to exercise the full fused math path.
        gamma = 0.5 + 0.1 * jax.random.normal(ks[8], (1, C), jnp.float32)
        beta = 0.1 * jax.random.normal(ks[9], (1, C), jnp.float32)
        mean = 0.1 * jax.random.normal(ks[10], (1, C), jnp.float32)
        var = 1.0 + 0.1 * jax.random.uniform(ks[11], (1, C), jnp.float32)
    else:
        # PyTorch init: constant_(weight, 0), constant_(bias, 0); default stats.
        gamma = jnp.zeros((1, C), jnp.float32)
        beta = jnp.zeros((1, C), jnp.float32)
        mean = jnp.zeros((1, C), jnp.float32)
        var = jnp.ones((1, C), jnp.float32)
    return (wg, bg, wth, bth, wph, bph, wW, bW, gamma, beta, mean, var)


if __name__ == "__main__":
    key = jax.random.PRNGKey(0)
    k_x, k_p1, k_p2 = jax.random.split(key, 3)

    B, C, H, W = 2, 4, 16, 16          # in_channels=4, reduc_ratio=2 -> inter=1
    x = jax.random.normal(k_x, (B, C, H, W), jnp.float32)

    # 1) Module as initialized in PyTorch (BN gamma=beta=0 -> z == x exactly).
    params = make_params(k_p1, C, random_bn=False)
    out = jax.block_until_ready(non_local_pallas(x, params))
    ref = non_local_ref(x, params)
    assert out.shape == (B, C, H, W)
    assert jnp.allclose(out, ref, atol=1e-4, rtol=1e-4), "mismatch vs reference (init params)"
    assert jnp.allclose(out, x, atol=1e-5)

    # 2) Non-trivial BN/W params to actually exercise the fused attention path.
    params2 = make_params(k_p2, C, random_bn=True)
    out2 = jax.block_until_ready(non_local_pallas(x, params2))
    ref2 = non_local_ref(x, params2)
    assert jnp.allclose(out2, ref2, atol=1e-4, rtol=1e-4), "mismatch vs reference (random BN)"

    # 3) Non-multiple-of-128 spatial size (14x14 -> N=196, padded to 256 lanes)
    #    to exercise the lane-padding + masked-reduction path.
    x3 = jax.random.normal(k_x, (2, 4, 14, 14), jnp.float32)
    out3 = jax.block_until_ready(non_local_pallas(x3, params2))
    ref3 = non_local_ref(x3, params2)
    assert jnp.allclose(out3, ref3, atol=1e-4, rtol=1e-4), "mismatch vs reference (padded N)"

    print("KERNEL_OK")
</pallas_src>

<mosaic_0001>
module attributes {stable_mosaic.version = 11 : i64} {
  func.func @_non_local_kernel(%arg0: i32, %arg1: memref<1x4x256xf32, #tpu.memory_space<vmem>>, %arg2: memref<3x5xf32, #tpu.memory_space<vmem>>, %arg3: memref<4x2xf32, #tpu.memory_space<vmem>>, %arg4: memref<1x4x256xf32, #tpu.memory_space<vmem>>) attributes {dimension_semantics = [#tpu.dimension_semantics<parallel>], iteration_bounds = array<i64: 2>, scalar_prefetch = 0 : i64, scratch_operands = 0 : i64, tpu.core_type = #tpu.core_type<tc>, window_params = [{transform_indices = @transform_0, window_bounds = array<i64: 1, 4, 256>}, {pipeline_mode = #tpu.pipeline_mode<synchronous>, transform_indices = @transform_1, window_bounds = array<i64: 3, 5>}, {pipeline_mode = #tpu.pipeline_mode<synchronous>, transform_indices = @transform_2, window_bounds = array<i64: 4, 2>}, {transform_indices = @transform_3, window_bounds = array<i64: 1, 4, 256>}]} {
    %c0 = arith.constant 0 : index
    %c0_0 = arith.constant 0 : index
    %c0_1 = arith.constant 0 : index
    %0 = vector.load %arg1[%c0, %c0_0, %c0_1] : memref<1x4x256xf32, #tpu.memory_space<vmem>>, vector<1x4x256xf32>
    %c0_2 = arith.constant 0 : index
    %c0_3 = arith.constant 0 : index
    %1 = vector.load %arg2[%c0_2, %c0_3] : memref<3x5xf32, #tpu.memory_space<vmem>>, vector<3x5xf32>
    %2 = vector.extract_strided_slice %1 {offsets = [0, 0], sizes = [1, 4], strides = [1, 1]} : vector<3x5xf32> to vector<1x4xf32>
    %3 = vector.extract_strided_slice %1 {offsets = [0, 4], sizes = [1, 1], strides = [1, 1]} : vector<3x5xf32> to vector<1x1xf32>
    %4 = vector.extract_strided_slice %1 {offsets = [1, 0], sizes = [1, 4], strides = [1, 1]} : vector<3x5xf32> to vector<1x4xf32>
    %5 = vector.extract_strided_slice %1 {offsets = [1, 4], sizes = [1, 1], strides = [1, 1]} : vector<3x5xf32> to vector<1x1xf32>
    %6 = vector.extract_strided_slice %1 {offsets = [2, 0], sizes = [1, 4], strides = [1, 1]} : vector<3x5xf32> to vector<1x4xf32>
    %7 = vector.extract_strided_slice %1 {offsets = [2, 4], sizes = [1, 1], strides = [1, 1]} : vector<3x5xf32> to vector<1x1xf32>
    %8 = vector.shape_cast %2 : vector<1x4xf32> to vector<1x4x1xf32>
    %9 = vector.broadcast %8 : vector<1x4x1xf32> to vector<1x4x256xf32>
    %10 = arith.mulf %0, %9 : vector<1x4x256xf32>
    %cst = arith.constant dense<0.000000e+00> : vector<1x256xf32>
    %11 = vector.multi_reduction <add>, %10, %cst [1] : vector<1x4x256xf32> to vector<1x256xf32>
    %12 = vector.shape_cast %11 : vector<1x256xf32> to vector<1x1x256xf32>
    %13 = vector.shape_cast %3 : vector<1x1xf32> to vector<1x1x1xf32>
    %14 = vector.broadcast %13 : vector<1x1x1xf32> to vector<1x1x256xf32>
    %15 = arith.addf %12, %14 : vector<1x1x256xf32>
    %16 = vector.shape_cast %4 : vector<1x4xf32> to vector<1x4x1xf32>
    %17 = vector.broadcast %16 : vector<1x4x1xf32> to vector<1x4x256xf32>
    %18 = arith.mulf %0, %17 : vector<1x4x256xf32>
    %cst_4 = arith.constant dense<0.000000e+00> : vector<1x256xf32>
    %19 = vector.multi_reduction <add>, %18, %cst_4 [1] : vector<1x4x256xf32> to vector<1x256xf32>
    %20 = vector.shape_cast %19 : vector<1x256xf32> to vector<1x1x256xf32>
    %21 = vector.shape_cast %5 : vector<1x1xf32> to vector<1x1x1xf32>
    %22 = vector.broadcast %21 : vector<1x1x1xf32> to vector<1x1x256xf32>
    %23 = arith.addf %20, %22 : vector<1x1x256xf32>
    %24 = vector.shape_cast %6 : vector<1x4xf32> to vector<1x4x1xf32>
    %25 = vector.broadcast %24 : vector<1x4x1xf32> to vector<1x4x256xf32>
    %26 = arith.mulf %0, %25 : vector<1x4x256xf32>
    %cst_5 = arith.constant dense<0.000000e+00> : vector<1x256xf32>
    %27 = vector.multi_reduction <add>, %26, %cst_5 [1] : vector<1x4x256xf32> to vector<1x256xf32>
    %28 = vector.shape_cast %27 : vector<1x256xf32> to vector<1x1x256xf32>
    %29 = vector.shape_cast %7 : vector<1x1xf32> to vector<1x1x1xf32>
    %30 = vector.broadcast %29 : vector<1x1x1xf32> to vector<1x1x256xf32>
    %31 = arith.addf %28, %30 : vector<1x1x256xf32>
    %32 = arith.mulf %23, %31 : vector<1x1x256xf32>
    %cst_6 = arith.constant dense<0.000000e+00> : vector<1x1xf32>
    %33 = vector.multi_reduction <add>, %32, %cst_6 [2] : vector<1x1x256xf32> to vector<1x1xf32>
    %34 = vector.shape_cast %33 : vector<1x1xf32> to vector<1x1x1xf32>
    %cst_7 = arith.constant 3.906250e-03 : f32
    %35 = vector.broadcast %cst_7 : f32 to vector<1x1x1xf32>
    %36 = arith.mulf %34, %35 : vector<1x1x1xf32>
    %37 = vector.broadcast %36 : vector<1x1x1xf32> to vector<1x1x256xf32>
    %38 = arith.mulf %15, %37 : vector<1x1x256xf32>
    %c0_8 = arith.constant 0 : index
    %c0_9 = arith.constant 0 : index
    %39 = vector.load %arg3[%c0_8, %c0_9] : memref<4x2xf32, #tpu.memory_space<vmem>>, vector<4x1xf32>
    %c0_10 = arith.constant 0 : index
    %c1 = arith.constant 1 : index
    %40 = vector.load %arg3[%c0_10, %c1] : memref<4x2xf32, #tpu.memory_space<vmem>>, vector<4x1xf32>
    %41 = vector.shape_cast %39 : vector<4x1xf32> to vector<1x4x1xf32>
    %42 = vector.broadcast %38 : vector<1x1x256xf32> to vector<1x4x256xf32>
    %43 = vector.broadcast %41 : vector<1x4x1xf32> to vector<1x4x256xf32>
    %44 = arith.mulf %42, %43 : vector<1x4x256xf32>
    %45 = arith.addf %0, %44 : vector<1x4x256xf32>
    %46 = vector.shape_cast %40 : vector<4x1xf32> to vector<1x4x1xf32>
    %47 = vector.broadcast %46 : vector<1x4x1xf32> to vector<1x4x256xf32>
    %48 = arith.addf %45, %47 : vector<1x4x256xf32>
    %c0_11 = arith.constant 0 : index
    %c0_12 = arith.constant 0 : index
    %c0_13 = arith.constant 0 : index
    %49 = vector.load %arg4[%c0_11, %c0_12, %c0_13] : memref<1x4x256xf32, #tpu.memory_space<vmem>>, vector<1x4x256xf32>
    tpu.vector_store %arg4[%c0_11, %c0_12, %c0_13], %48 {strides = array<i32>} : memref<1x4x256xf32, #tpu.memory_space<vmem>>, vector<1x4x256xf32>,
    return
  }
  func.func @transform_0(%arg0: i32) -> (i32, i32, i32) {
    %c0_i32 = arith.constant 0 : i32
    %c0_i32_0 = arith.constant 0 : i32
    %c0_i32_1 = arith.constant 0 : i32
    return %arg0, %c0_i32, %c0_i32_0 : i32, i32, i32
  }
  func.func @transform_1(%arg0: i32) -> (i32, i32) {
    %c0_i32 = arith.constant 0 : i32
    %c0_i32_0 = arith.constant 0 : i32
    %c0_i32_1 = arith.constant 0 : i32
    return %c0_i32, %c0_i32_0 : i32, i32
  }
  func.func @transform_2(%arg0: i32) -> (i32, i32) {
    %c0_i32 = arith.constant 0 : i32
    %c0_i32_0 = arith.constant 0 : i32
    %c0_i32_1 = arith.constant 0 : i32
    return %c0_i32, %c0_i32_0 : i32, i32
  }
  func.func @transform_3(%arg0: i32) -> (i32, i32, i32) {
    %c0_i32 = arith.constant 0 : i32
    %c0_i32_0 = arith.constant 0 : i32
    %c0_i32_1 = arith.constant 0 : i32
    return %arg0, %c0_i32, %c0_i32_0 : i32, i32, i32
  }
}

</mosaic_0001>

<llo_original>
// kernel: tpu_custom_call.1
$region0: #{tpu_custom_call.1}
  #allocation0 [shape = 'u32[]', space=smem, size = 0x4, offset = 0x4, fixed_abs, tag = 'smem constant byte address 0x4 - core index']
  #allocation1 [shape = 'u32[144,128]{1,0:T(1,128)}', space=vmem, size = 0x12000, scoped, tag = 'internal scratch']
  %s0 = inlined_call_operand.hbm [shape: f32[2,4,256], index: 0, kind: input, shape index: {}, may-alias: {0,3}]
  %s1 = inlined_call_operand.vmem [shape: f32[3,5], index: 1, kind: input, shape index: {}]
  %s2 = inlined_call_operand.vmem [shape: f32[4,2], index: 2, kind: input, shape index: {}]
  %s3 = inlined_call_operand.hbm [shape: f32[2,4,256], index: 3, kind: output, shape index: {}, may-alias: {0,3}]
  %s4 = sld [smem:[#allocation0]]
  $region49: #{tpu_custom_call.1} parent=0
    _
  %s6 = ssub.s32 1, %s4
  %s7 = scalar_select 0, %s6, %s4
  $region1: #{tpu_custom_call.1} parent=0
    #allocation2 [shape = 'u8[8192]{0}', space=vmem, size = 0x2000, scoped, tag = 'input window, operand 0']
    #allocation3 [shape = 's32[2]{0}', space=sflag, size = 0x8, scoped, tag = 'scoped memory for tpu_custom_call.1']
    #allocation4 [shape = 's32[2]{0}', space=sflag, size = 0x8, scoped, tag = 'scoped memory for tpu_custom_call.1']
    #allocation5 [shape = 'u8[8192]{0}', space=vmem, size = 0x2000, scoped, tag = 'output window, operand 0']
    %8 = vsyncpa [#allocation3], 0
    %s9 = scalar_lea.sflag [#allocation3], 1
    %10 = vsyncpa %s9, 0
    %11 = vsyncpa [#allocation4], 0
    %s12 = scalar_lea.sflag [#allocation4], 1
    %13 = vsyncpa %s12, 0
    loop: start=0, step=1, limit=4
    $region2: #{tpu_custom_call.1} parent=1 // loop_pre_header
      _
    $region3: #{tpu_custom_call.1} parent=1 // loop_header
      %s15 = sphi 0, %s19
      %p16 = scmp.ge.s32.totalorder %s15, 4
      %s25 = sphi 0, %s27
      %s28 = sphi 0, %s25
      %s29 = sphi 0, %s28
      %s45 = sphi 0, %s29
      %s49 = sphi 0, %s49
      %s51 = sphi 0, %s49
      %s52 = sphi 0, %s51
      %s66 = sphi 0, %s52
      %s70 = sphi 0, %s70
      %s72 = sphi 0, %s70
      %s73 = sphi 0, %s72
      %s87 = sphi 0, %s73
      %s93 = sphi 0, %s95
      %s96 = sphi 0, %s93
      %s97 = sphi 0, %s96
      %s113 = sphi 0, %s97
    $region4: #{tpu_custom_call.1} parent=1 // loop_header_branch
      %18 = sbr.rel (%p16) target = $region8
    $region5: #{tpu_custom_call.1} parent=1 // loop_body
      %s20 = ssub.s32 %s15, 1
      %s21 = ssub.s32 %s15, 2
      %s22 = sadd.s32 %s15, 1
      %s23 = ssub.s32 %s15, %s22
      %p24 = scmp.eq.s32.totalorder %s23, 0
      %s26 = sadd.s32 %s25, 1
      %s27 = scalar_select %p24, %s25, %s26
      %p30 = pneg %p24
      %p31 = scmp.eq.s32.totalorder %s15, 1
      %p32 = por %p30, %p31
      %p33 = scmp.ne.s32.totalorder %s25, %s28
      %p34 = scmp.eq.s32.totalorder %s15, 0
      %p35 = por %p33, %p34
      %p36 = scmp.ne.s32.totalorder %s25, %s28
      %p37 = scmp.eq.s32.totalorder %s20, 1
      %p38 = por %p36, %p37
      %p39 = scmp.ne.s32.totalorder %s28, %s29
      %p40 = scmp.eq.s32.totalorder %s20, 0
      %p41 = por %p39, %p40
      %p42 = scmp.ne.s32.totalorder %s28, %s29
      %p43 = scmp.eq.s32.totalorder %s21, 1
      %p44 = por %p42, %p43
      %p46 = scmp.ne.s32.totalorder %s29, %s45
      %p47 = scmp.eq.s32.totalorder %s21, 0
      %p48 = por %p46, %p47
      %s50 = sadd.s32 %s49, 1
      %p53 = scmp.eq.s32.totalorder %s15, 1
      %p54 = scmp.ne.s32.totalorder %s49, %s51
      %p55 = scmp.eq.s32.totalorder %s15, 0
      %p56 = por %p54, %p55
      %p57 = scmp.ne.s32.totalorder %s49, %s51
      %p58 = scmp.eq.s32.totalorder %s20, 1
      %p59 = por %p57, %p58
      %p60 = scmp.ne.s32.totalorder %s51, %s52
      %p61 = scmp.eq.s32.totalorder %s20, 0
      %p62 = por %p60, %p61
      %p63 = scmp.ne.s32.totalorder %s51, %s52
      %p64 = scmp.eq.s32.totalorder %s21, 1
      %p65 = por %p63, %p64
      %p67 = scmp.ne.s32.totalorder %s52, %s66
      %p68 = scmp.eq.s32.totalorder %s21, 0
      %p69 = por %p67, %p68
      %s71 = sadd.s32 %s70, 1
      %p74 = scmp.eq.s32.totalorder %s15, 1
      %p75 = scmp.ne.s32.totalorder %s70, %s72
      %p76 = scmp.eq.s32.totalorder %s15, 0
      %p77 = por %p75, %p76
      %p78 = scmp.ne.s32.totalorder %s70, %s72
      %p79 = scmp.eq.s32.totalorder %s20, 1
      %p80 = por %p78, %p79
      %p81 = scmp.ne.s32.totalorder %s72, %s73
      %p82 = scmp.eq.s32.totalorder %s20, 0
      %p83 = por %p81, %p82
      %p84 = scmp.ne.s32.totalorder %s72, %s73
      %p85 = scmp.eq.s32.totalorder %s21, 1
      %p86 = por %p84, %p85
      %p88 = scmp.ne.s32.totalorder %s73, %s87
      %p89 = scmp.eq.s32.totalorder %s21, 0
      %p90 = por %p88, %p89
      %s91 = ssub.s32 %s15, %s22
      %p92 = scmp.eq.s32.totalorder %s91, 0
      %s94 = sadd.s32 %s93, 1
      %s95 = scalar_select %p92, %s93, %s94
      %p98 = pneg %p92
      %p99 = scmp.eq.s32.totalorder %s15, 1
      %p100 = por %p98, %p99
      %p101 = scmp.ne.s32.totalorder %s93, %s96
      %p102 = scmp.eq.s32.totalorder %s15, 0
      %p103 = por %p101, %p102
      %p104 = scmp.ne.s32.totalorder %s93, %s96
      %p105 = scmp.eq.s32.totalorder %s20, 1
      %p106 = por %p104, %p105
      %p107 = scmp.ne.s32.totalorder %s96, %s97
      %p108 = scmp.eq.s32.totalorder %s20, 0
      %p109 = por %p107, %p108
      %p110 = scmp.ne.s32.totalorder %s96, %s97
      %p111 = scmp.eq.s32.totalorder %s21, 1
      %p112 = por %p110, %p111
      %p114 = scmp.ne.s32.totalorder %s97, %s113
      %p115 = scmp.eq.s32.totalorder %s21, 0
      %p116 = por %p114, %p115
      %p117 = scmp.le.s32.totalorder 1, %s15
      %p118 = scmp.lt.s32.totalorder %s15, 3
      %p119 = pnand %p117, %p118
      %p120 = pneg %p119
      // Predicated region
      $region9: #{tpu_custom_call.1} parent=5 // pred_check
        _
      $region10: #{tpu_custom_call.1} parent=5 // pred_check_branch
        %122 = sbr.rel (%p119) target = $region12
      $region11: #{tpu_custom_call.1} parent=5 // pred_region
        %s123 = ssub.s32 %s15, 1
        // Predicated region
        $region13: #{tpu_custom_call.1} parent=11 // pred_check
          %p124 = pneg %p62
        $region14: #{tpu_custom_call.1} parent=11 // pred_check_branch
          %126 = sbr.rel (%p124) target = $region16
        $region15: #{tpu_custom_call.1} parent=11 // pred_region
          _
        $region16: #{tpu_custom_call.1} parent=11 // pred_fallthru
          _
        // Predicated region
        $region17: #{tpu_custom_call.1} parent=11 // pred_check
          %p127 = pneg %p83
        $region18: #{tpu_custom_call.1} parent=11 // pred_check_branch
          %129 = sbr.rel (%p127) target = $region20
        $region19: #{tpu_custom_call.1} parent=11 // pred_region
          _
        $region20: #{tpu_custom_call.1} parent=11 // pred_fallthru
          _
      $region12: #{tpu_custom_call.1} parent=5 // pred_fallthru
        _
      %p130 = scmp.lt.s32.totalorder %s15, 2
      // Predicated region
      $region21: #{tpu_custom_call.1} parent=5 // pred_check
        %p131 = pneg %p130
      $region22: #{tpu_custom_call.1} parent=5 // pred_check_branch
        %133 = sbr.rel (%p131) target = $region24
      $region23: #{tpu_custom_call.1} parent=5 // pred_region
        // Predicated region
        $region25: #{tpu_custom_call.1} parent=23 // pred_check
          %p134 = pneg %p35
        $region26: #{tpu_custom_call.1} parent=23 // pred_check_branch
          %136 = sbr.rel (%p134) target = $region28
        $region27: #{tpu_custom_call.1} parent=23 // pred_region
          %s137 = sand.u32 %s25, 1
          %s138 = scalar_lea.sflag [#allocation3], %s137
          %s139 = sand.u32 %s25, 1
          %s140 = smul.addr %s139, 8
          %s141 = scalar_lea.vmem [#allocation2], %s140
          %s143 = ssub.s32 128, 128
          %144 = vsyncadd %s138, %s143
          %s145 = smul.addr %s15, 2
          %s146 = smul.addr %s145, 64
          %s147 = scalar_lea.hbm %s0, %s146
          %s149 = sshll.u32 %s141, 4
          %s150 = int_to_ptr.vmem [resolvable:$true] %s149
          %152 = dma.hbm_to_vmem [thread:$0]  %s147, 128, %s150, %s138
        $region28: #{tpu_custom_call.1} parent=23 // pred_fallthru
          _
      $region24: #{tpu_custom_call.1} parent=5 // pred_fallthru
        _
      %p153 = scmp.le.s32.totalorder 1, %s15
      %p154 = scmp.lt.s32.totalorder %s15, 3
      %p155 = pnand %p153, %p154
      %p156 = pneg %p155
      // Predicated region
      $region29: #{tpu_custom_call.1} parent=5 // pred_check
        _
      $region30: #{tpu_custom_call.1} parent=5 // pred_check_branch
        %158 = sbr.rel (%p155) target = $region32
      $region31: #{tpu_custom_call.1} parent=5 // pred_region
        %s159 = ssub.s32 %s15, 1
        %s160 = sand.u32 %s28, 1
        %s161 = scalar_lea.sflag [#allocation3], %s160
        %s162 = sand.u32 %s28, 1
        %s163 = smul.addr %s162, 8
        %s164 = scalar_lea.vmem [#allocation2], %s163
        // Predicated region
        $region33: #{tpu_custom_call.1} parent=31 // pred_check
          %p165 = pneg %p41
        $region34: #{tpu_custom_call.1} parent=31 // pred_check_branch
          %167 = sbr.rel (%p165) target = $region36
        $region35: #{tpu_custom_call.1} parent=31 // pred_region
          %168 = dma.done %s161, 128
        $region36: #{tpu_custom_call.1} parent=31 // pred_fallthru
          _
        %s169 = sand.u32 %s28, 1
        %s170 = scalar_lea.sflag [#allocation3], %s169
        %s171 = sand.u32 %s28, 1
        %s172 = smul.addr %s171, 8
        %s173 = scalar_lea.vmem [#allocation2], %s172
        %p174 = pneg %p41
        %p175 = pneg %p38
        %p176 = pneg %p62
        %p177 = pneg %p59
        %p178 = pneg %p83
        %p179 = pneg %p80
        %p180 = pneg %p109
        %p181 = pneg %p106
        %s182 = sand.u32 %s96, 1
        %s183 = scalar_lea.sflag [#allocation4], %s182
        %s184 = sand.u32 %s96, 1
        %s185 = smul.addr %s184, 8
        %s186 = scalar_lea.vmem [#allocation5], %s185
        %v187 = vld [vmem:[%s164] sm:$0xff]
        %v188 = vld [vmem:[%s1] sm:$0x7]
        %v189 = vlaneseq
        %v190 = vshrl.u32 %v189, 7
        %v191 = vsub.s32 0, %v190
        %v192 = vrot.slane %v188, %v191
        %194 = vbcast.lane.b32.xlu0 %v192, 256
        %v195 = vpop.permute.xlu0 %194
        %v198 = vunpack.c.l.s4 839922192
        %v199 = vunpack.c.0.s8 %v198
        %v200 = vlaneseq
        %v201 = vshrl.u32 %v200, 7
        %v202 = vsub.s32 %v199, %v201
        %v203 = vrot.slane %v195, %v202
        %v205 = vmul.f32 %v187, %v203
        %v207 = vcombine.high %v205, %v205
        %vm209 = vcmask 1043456
        %v210 = vsel %vm209, %v205, 0.0
        %v211 = vrot.slane %v210, 4
        %v212 = vadd.f32 %v210, %v211
        %v213 = vrot.slane %v212, 2
        %v214 = vadd.f32 %v212, %v213
        %v215 = vrot.slane %v214, 1
        %v216 = vadd.f32 %v214, %v215
        %v217 = vsel %vm209, %v207, 0.0
        %v218 = vrot.slane %v217, 4
        %v219 = vadd.f32 %v217, %v218
        %v220 = vrot.slane %v219, 2
        %v221 = vadd.f32 %v219, %v220
        %v222 = vrot.slane %v221, 1
        %v223 = vadd.f32 %v221, %v222
        %225 = vset.pattern.permute.xlu0 4
        %226 = vperm.xlu0 %225, %v188
        %v227 = vpop.permute.xlu0 %226
        %v229 = vadd.f32 %v216, %v227
        %v230 = vadd.f32 %v223, %v227
        %v231 = vlaneseq
        %v232 = vshrl.u32 %v231, 7
        %v233 = vsub.s32 1, %v232
        %v234 = vrot.slane %v188, %v233
        %236 = vbcast.lane.b32.xlu0 %v234, 256
        %v237 = vpop.permute.xlu0 %236
        %v240 = vunpack.c.l.s4 839922192
        %v241 = vunpack.c.0.s8 %v240
        %v242 = vlaneseq
        %v243 = vshrl.u32 %v242, 7
        %v244 = vsub.s32 %v241, %v243
        %v245 = vrot.slane %v237, %v244
        %v247 = vmul.f32 %v187, %v245
        %v249 = vcombine.high %v247, %v247
        %v251 = vsel %vm209, %v247, 0.0
        %v252 = vrot.slane %v251, 4
        %v253 = vadd.f32 %v251, %v252
        %v254 = vrot.slane %v253, 2
        %v255 = vadd.f32 %v253, %v254
        %v256 = vrot.slane %v255, 1
        %v257 = vadd.f32 %v255, %v256
        %v258 = vsel %vm209, %v249, 0.0
        %v259 = vrot.slane %v258, 4
        %v260 = vadd.f32 %v258, %v259
        %v261 = vrot.slane %v260, 2
        %v262 = vadd.f32 %v260, %v261
        %v263 = vrot.slane %v262, 1
        %v264 = vadd.f32 %v262, %v263
        %v265 = vadd.f32 %v257, %v227
        %v266 = vadd.f32 %v264, %v227
        %v267 = vlaneseq
        %v268 = vshrl.u32 %v267, 7
        %v269 = vsub.s32 2, %v268
        %v270 = vrot.slane %v188, %v269
        %272 = vbcast.lane.b32.xlu0 %v270, 256
        %v273 = vpop.permute.xlu0 %272
        %v276 = vunpack.c.l.s4 839922192
        %v277 = vunpack.c.0.s8 %v276
        %v278 = vlaneseq
        %v279 = vshrl.u32 %v278, 7
        %v280 = vsub.s32 %v277, %v279
        %v281 = vrot.slane %v273, %v280
        %v283 = vmul.f32 %v187, %v281
        %v285 = vcombine.high %v283, %v283
        %v287 = vsel %vm209, %v283, 0.0
        %v288 = vrot.slane %v287, 4
        %v289 = vadd.f32 %v287, %v288
        %v290 = vrot.slane %v289, 2
        %v291 = vadd.f32 %v289, %v290
        %v292 = vrot.slane %v291, 1
        %v293 = vadd.f32 %v291, %v292
        %v294 = vsel %vm209, %v285, 0.0
        %v295 = vrot.slane %v294, 4
        %v296 = vadd.f32 %v294, %v295
        %v297 = vrot.slane %v296, 2
        %v298 = vadd.f32 %v296, %v297
        %v299 = vrot.slane %v298, 1
        %v300 = vadd.f32 %v298, %v299
        %v301 = vadd.f32 %v293, %v227
        %v302 = vadd.f32 %v300, %v227
        %v305 = vrot.slane %v301, 1
        %v306 = vrot.slane %v302, 1
        %v309 = vmul.f32 %v265, %v305
        %v310 = vmul.f32 %v266, %v306
        %vm311 = vcmask 1041409
        %v312 = vsel %vm311, %v309, 0.0
        %v313 = vsel %vm311, %v310, 0.0
        %v314 = vadd.f32 %v312, %v313
        %315 = vadd.xlane.f32.xlu0 %v314
        %v316 = vpop.xlane.xlu0 %315
        %v317 = vmul.f32 %v316, 0.00390625
        %v319 = vrot.slane %v317, 1
        %v321 = vmul.f32 %v229, %v319
        %v322 = vmul.f32 %v230, %v319
        %v323 = vld [vmem:[%s2] sm:$0xf]
        %v324 = vlaneseq
        %v325 = vshrl.u32 %v324, 7
        %v326 = vsub.s32 0, %v325
        %v327 = vrot.slane %v321, %v326
        %v328 = vlaneseq
        %v329 = vshrl.u32 %v328, 7
        %v330 = vsub.s32 0, %v329
        %v331 = vrot.slane %v322, %v330
        %333 = vset.pattern.permute.xlu0 0
        %334 = vperm.xlu0 %333, %v323
        %v335 = vpop.permute.xlu0 %334
        %v337 = vmul.f32 %v327, %v335
        %v338 = vmul.f32 %v331, %v335
        %v341 = vcombine.low %v337, %v338
        %v343 = vadd.f32 %v187, %v341
        %344 = vset.pattern.permute.xlu0 1
        %345 = vperm.xlu0 %344, %v323
        %v346 = vpop.permute.xlu0 %345
        %v348 = vunpack.c.l.s4 839922192
        %v349 = vunpack.c.0.s8 %v348
        %v350 = vlaneseq
        %v351 = vshrl.u32 %v350, 7
        %v352 = vsub.s32 %v349, %v351
        %v353 = vrot.slane %v346, %v352
        %v355 = vadd.f32 %v343, %v353
        %356 = vst [vmem:[%s186] sm:$0xff] %v355
        %s357 = sand.u32 %s96, 1
        %s358 = scalar_lea.sflag [#allocation4], %s357
        %s359 = sand.u32 %s96, 1
        %s360 = smul.addr %s359, 8
        %s361 = scalar_lea.vmem [#allocation5], %s360
        // Predicated region
        $region37: #{tpu_custom_call.1} parent=31 // pred_check
          %p362 = pneg %p106
        $region38: #{tpu_custom_call.1} parent=31 // pred_check_branch
          %364 = sbr.rel (%p362) target = $region40
        $region39: #{tpu_custom_call.1} parent=31 // pred_region
          %s366 = ssub.s32 128, 128
          %367 = vsyncadd %s358, %s366
          %s368 = smul.addr %s20, 2
          %s369 = smul.addr %s368, 64
          %s370 = scalar_lea.hbm %s3, %s369
          %s372 = sshll.u32 %s361, 4
          %s373 = int_to_ptr.vmem [resolvable:$true] %s372
          %375 = dma.vmem_to_hbm [thread:$0]  %s373, 128, %s370, %s358
        $region40: #{tpu_custom_call.1} parent=31 // pred_fallthru
          _
      $region32: #{tpu_custom_call.1} parent=5 // pred_fallthru
        _
      %p376 = scmp.le.s32.totalorder 2, %s15
      // Predicated region
      $region41: #{tpu_custom_call.1} parent=5 // pred_check
        %p377 = pneg %p376
      $region42: #{tpu_custom_call.1} parent=5 // pred_check_branch
        %379 = sbr.rel (%p377) target = $region44
      $region43: #{tpu_custom_call.1} parent=5 // pred_region
        %s380 = ssub.s32 %s15, 2
        // Predicated region
        $region45: #{tpu_custom_call.1} parent=43 // pred_check
          %p381 = pneg %p112
        $region46: #{tpu_custom_call.1} parent=43 // pred_check_branch
          %383 = sbr.rel (%p381) target = $region48
        $region47: #{tpu_custom_call.1} parent=43 // pred_region
          %s384 = sand.u32 %s97, 1
          %s385 = scalar_lea.sflag [#allocation4], %s384
          %s386 = sand.u32 %s97, 1
          %s387 = smul.addr %s386, 8
          %s388 = scalar_lea.vmem [#allocation5], %s387
          %389 = dma.done %s385, 128
        $region48: #{tpu_custom_call.1} parent=43 // pred_fallthru
          _
      $region44: #{tpu_custom_call.1} parent=5 // pred_fallthru
        _
    $region6: #{tpu_custom_call.1} parent=1 // loop_footer
      %s19 = sadd.s32 1, %s15
    $region7: #{tpu_custom_call.1} parent=1 // loop_footer_branch
      %14 = sbr.rel target = $region3
    $region8: #{tpu_custom_call.1} parent=1 // loop_exit
      _
    %390 = vsyncpa [#allocation3], 1
    %s391 = scalar_lea.sflag [#allocation3], 1
    %392 = vsyncpa %s391, 1
    %393 = vsyncpa [#allocation4], 1
    %s394 = scalar_lea.sflag [#allocation4], 1
    %395 = vsyncpa %s394, 1

</llo_original>
